<compile_context>
chip_gen: v7x
topology: tpu7x:2x2x1
jax: 0.10.0
libtpu: 0.0.40
codegen_flags: <defaults>
</compile_context>

<pallas_src>
import jax
import jax.numpy as jnp
import numpy as np
from jax import lax
from jax.experimental import pallas as pl
from jax.experimental.pallas import tpu as pltpu

BN_EPS = 1e-5
_MAX_BLOCK_N = 8                  # cap images/step (bounds kernel unroll length)
_ACT_VMEM_BUDGET = 16 << 20       # double-buffered activation bytes per grid step


# ----------------------------------------------------------------------------
# Pallas kernel: fused 1x1 conv + folded BN + ReLU (Nb images per step, NCHW)
# ----------------------------------------------------------------------------
def _conv1x1_bn_relu_kernel(x_ref, w_ref, b_ref, o_ref):
    # x_ref: (Nb, Cin, HWp)   w_ref: (Cout, Cin) bf16, BN scale pre-folded
    # b_ref: (Cout, 1) f32    o_ref: (Nb, Cout, HWp)
    w = w_ref[...]
    b = b_ref[...]
    nb = x_ref.shape[0]
    # Static unroll: Nb is a compile-time block constant and kept small.
    # Each iteration is a plain 2-D MXU matmul with a lane-dense (HWp) output,
    # avoiding any batched-dot transpose/relayout.
    for n in range(nb):
        x_n = x_ref[n].astype(jnp.bfloat16)                        # (Cin, HWp)
        y = jnp.dot(w, x_n, preferred_element_type=jnp.float32)    # (Cout, HWp)
        o_ref[n] = jnp.maximum(y + b, 0.0).astype(o_ref.dtype)


def _choose_block_n(N, per_img_bytes):
    """Pick images-per-step: fit VMEM budget, keep >=2 grid steps, divide N."""
    nb = int(max(1, min(_MAX_BLOCK_N, _ACT_VMEM_BUDGET // max(per_img_bytes, 1))))
    if N >= 2:
        nb = min(nb, (N + 1) // 2)   # >= 2 grid steps so v7x's 2 TCs both work
    nb = min(nb, N)
    while N % nb != 0:               # exact division -> no partial blocks
        nb -= 1
    return nb


def conv1x1_bn_relu(x_nchw, w_oi, conv_b, gamma, beta, mean, var,
                    eps=BN_EPS, out_dtype=None):
    """Conv2d(kernel_size=1) + BatchNorm2d(running stats) + ReLU, fused.

    x_nchw : (N, Cin, H, W)
    w_oi   : (Cout, Cin)   (the (Cout, Cin, 1, 1) conv weight, squeezed)
    conv_b : (Cout,)       conv bias
    gamma, beta, mean, var : (Cout,) BatchNorm parameters / running statistics
    out_dtype : output dtype; default = x dtype. Pass jnp.bfloat16 if the next
                layer consumes bf16 (halves write-side HBM traffic).
    """
    N, Cin, H, W = x_nchw.shape
    Cout = w_oi.shape[0]
    HW = H * W
    HWp = ((HW + 127) // 128) * 128          # lane-dense stores for any H*W
    out_dtype = x_nchw.dtype if out_dtype is None else out_dtype

    # Fold BN (inference semantics) + conv bias into per-channel scale/bias, then
    # fold the scale into the (tiny, constant) weights once in the wrapper.
    scale = gamma / jnp.sqrt(var + eps)
    bias = (beta + (conv_b - mean) * scale).astype(jnp.float32).reshape(Cout, 1)
    w_folded = (w_oi * scale[:, None]).astype(jnp.bfloat16)        # (Cout, Cin)

    x = x_nchw.reshape(N, Cin, HW)           # contiguous reshape, no copy
    if HWp != HW:
        x = jnp.pad(x, ((0, 0), (0, 0), (0, HWp - HW)))

    x_bytes = jnp.dtype(x.dtype).itemsize
    o_bytes = jnp.dtype(out_dtype).itemsize
    per_img = 2 * HWp * (Cin * x_bytes + Cout * o_bytes)   # double-buffered
    nb = _choose_block_n(N, per_img)
    grid = (N // nb,)

    # VMEM limit: what this tiling needs plus headroom; >=32 MiB, <=48 MiB so it
    # is valid on v7x's 64 MiB physical VMEM while lifting v5e's 16 MiB default.
    vmem_need = nb * per_img + w_folded.size * 2 + Cout * 4
    vmem_limit = int(min(max(2 * vmem_need, 32 << 20), 48 << 20))

    flops = 2 * N * Cout * Cin * HW
    bytes_accessed = (N * Cin * HWp * x_bytes + N * Cout * HWp * o_bytes
                      + w_folded.size * 2 + Cout * 4)

    out = pl.pallas_call(
        _conv1x1_bn_relu_kernel,
        out_shape=jax.ShapeDtypeStruct((N, Cout, HWp), out_dtype),
        grid=grid,
        in_specs=[
            pl.BlockSpec((nb, Cin, HWp), lambda i: (i, 0, 0)),
            pl.BlockSpec((Cout, Cin), lambda i: (0, 0)),
            pl.BlockSpec((Cout, 1), lambda i: (0, 0)),
        ],
        out_specs=pl.BlockSpec((nb, Cout, HWp), lambda i: (i, 0, 0)),
        compiler_params=pltpu.CompilerParams(
            dimension_semantics=("parallel",),
            vmem_limit_bytes=vmem_limit),
        cost_estimate=pl.CostEstimate(
            flops=flops, transcendentals=0, bytes_accessed=bytes_accessed),
    )(x, w_folded, bias)

    if HWp != HW:
        out = out[:, :, :HW]
    return out.reshape(N, Cout, H, W)


# ----------------------------------------------------------------------------
# Pure-JAX reference (inference-mode BatchNorm) for correctness checking
# ----------------------------------------------------------------------------
def ref_forward(x_nchw, w_oi, conv_b, gamma, beta, mean, var, eps=BN_EPS):
    Cout, Cin = w_oi.shape
    w4 = w_oi.reshape(Cout, Cin, 1, 1)
    y = lax.conv_general_dilated(
        x_nchw, w4, (1, 1), "VALID",
        dimension_numbers=("NCHW", "OIHW", "NCHW"))
    y = y + conv_b.reshape(1, Cout, 1, 1)
    y = (y - mean.reshape(1, Cout, 1, 1)) / jnp.sqrt(var.reshape(1, Cout, 1, 1) + eps)
    y = y * gamma.reshape(1, Cout, 1, 1) + beta.reshape(1, Cout, 1, 1)
    return jnp.maximum(y, 0.0)


# ----------------------------------------------------------------------------
# Demo / self-test
# ----------------------------------------------------------------------------
if __name__ == "__main__":
    key = jax.random.PRNGKey(0)
    k_x, k_w, k_b, k_g, k_be, k_m, k_v = jax.random.split(key, 7)

    N, Cin, H, W = 2, 4, 16, 16
    Cout = 64

    x = jax.random.normal(k_x, (N, Cin, H, W), jnp.float32)
    w = jax.random.normal(k_w, (Cout, Cin), jnp.float32) / np.sqrt(Cin)
    conv_b = jax.random.normal(k_b, (Cout,), jnp.float32) * 0.1
    gamma = jax.random.uniform(k_g, (Cout,), jnp.float32, 0.5, 1.5)
    beta = jax.random.normal(k_be, (Cout,), jnp.float32) * 0.1
    mean = jax.random.normal(k_m, (Cout,), jnp.float32) * 0.1
    var = jax.random.uniform(k_v, (Cout,), jnp.float32, 0.5, 1.5)

    out = jax.block_until_ready(
        conv1x1_bn_relu(x, w, conv_b, gamma, beta, mean, var))
    assert out.shape == (N, Cout, H, W), out.shape

    ref = jax.block_until_ready(
        ref_forward(x, w, conv_b, gamma, beta, mean, var))
    # bf16 MXU inputs (scale folded into bf16 weights) with f32 accumulation
    # -> comfortably within 2e-2 of the f32 reference.
    np.testing.assert_allclose(np.asarray(out), np.asarray(ref),
                               rtol=2e-2, atol=2e-2)

    print("KERNEL_OK")
</pallas_src>

<mosaic_0001>
module attributes {stable_mosaic.version = 11 : i64} {
  func.func @_conv1x1_bn_relu_kernel(%arg0: i32, %arg1: memref<1x4x256xf32, #tpu.memory_space<vmem>>, %arg2: memref<64x4xbf16, #tpu.memory_space<vmem>>, %arg3: memref<64x1xf32, #tpu.memory_space<vmem>>, %arg4: memref<1x64x256xf32, #tpu.memory_space<vmem>>) attributes {dimension_semantics = [#tpu.dimension_semantics<parallel>], iteration_bounds = array<i64: 2>, scalar_prefetch = 0 : i64, scratch_operands = 0 : i64, tpu.core_type = #tpu.core_type<tc>, window_params = [{transform_indices = @transform_0, window_bounds = array<i64: 1, 4, 256>}, {pipeline_mode = #tpu.pipeline_mode<synchronous>, transform_indices = @transform_1, window_bounds = array<i64: 64, 4>}, {pipeline_mode = #tpu.pipeline_mode<synchronous>, transform_indices = @transform_2, window_bounds = array<i64: 64, 1>}, {transform_indices = @transform_3, window_bounds = array<i64: 1, 64, 256>}]} {
    %c0 = arith.constant 0 : index
    %c0_0 = arith.constant 0 : index
    %0 = vector.load %arg2[%c0, %c0_0] : memref<64x4xbf16, #tpu.memory_space<vmem>>, vector<64x4xbf16>
    %c0_1 = arith.constant 0 : index
    %c0_2 = arith.constant 0 : index
    %1 = vector.load %arg3[%c0_1, %c0_2] : memref<64x1xf32, #tpu.memory_space<vmem>>, vector<64x1xf32>
    %c0_3 = arith.constant 0 : index
    %c0_4 = arith.constant 0 : index
    %c0_5 = arith.constant 0 : index
    %2 = vector.load %arg1[%c0_3, %c0_4, %c0_5] : memref<1x4x256xf32, #tpu.memory_space<vmem>>, vector<1x4x256xf32>
    %3 = vector.shape_cast %2 : vector<1x4x256xf32> to vector<4x256xf32>
    %4 = arith.truncf %3 : vector<4x256xf32> to vector<4x256xbf16>
    %cst = arith.constant dense<0.000000e+00> : vector<64x256xf32>
    %5 = tpu.matmul %0, %4, %cst {dimension_numbers = #tpu.dot_dimension_numbers<[1], [0], [0], [1], [0, 0, 1, 1], [], []>} : vector<64x4xbf16>, vector<4x256xbf16>, vector<64x256xf32> -> vector<64x256xf32>
    %6 = vector.broadcast %1 : vector<64x1xf32> to vector<64x256xf32>
    %7 = arith.addf %5, %6 : vector<64x256xf32>
    %cst_6 = arith.constant 0.000000e+00 : f32
    %8 = vector.broadcast %cst_6 : f32 to vector<64x256xf32>
    %9 = arith.maximumf %7, %8 : vector<64x256xf32>
    %c0_7 = arith.constant 0 : index
    %c0_8 = arith.constant 0 : index
    %c0_9 = arith.constant 0 : index
    %10 = vector.load %arg4[%c0_7, %c0_8, %c0_9] : memref<1x64x256xf32, #tpu.memory_space<vmem>>, vector<1x64x256xf32>
    %11 = vector.shape_cast %10 : vector<1x64x256xf32> to vector<64x256xf32>
    %12 = vector.shape_cast %9 : vector<64x256xf32> to vector<1x64x256xf32>
    tpu.vector_store %arg4[%c0_7, %c0_8, %c0_9], %12 {strides = array<i32>} : memref<1x64x256xf32, #tpu.memory_space<vmem>>, vector<1x64x256xf32>,
    return
  }
  func.func @transform_0(%arg0: i32) -> (i32, i32, i32) {
    %c0_i32 = arith.constant 0 : i32
    %c0_i32_0 = arith.constant 0 : i32
    %c0_i32_1 = arith.constant 0 : i32
    return %arg0, %c0_i32, %c0_i32_0 : i32, i32, i32
  }
  func.func @transform_1(%arg0: i32) -> (i32, i32) {
    %c0_i32 = arith.constant 0 : i32
    %c0_i32_0 = arith.constant 0 : i32
    %c0_i32_1 = arith.constant 0 : i32
    return %c0_i32, %c0_i32_0 : i32, i32
  }
  func.func @transform_2(%arg0: i32) -> (i32, i32) {
    %c0_i32 = arith.constant 0 : i32
    %c0_i32_0 = arith.constant 0 : i32
    %c0_i32_1 = arith.constant 0 : i32
    return %c0_i32, %c0_i32_0 : i32, i32
  }
  func.func @transform_3(%arg0: i32) -> (i32, i32, i32) {
    %c0_i32 = arith.constant 0 : i32
    %c0_i32_0 = arith.constant 0 : i32
    %c0_i32_1 = arith.constant 0 : i32
    return %arg0, %c0_i32, %c0_i32_0 : i32, i32, i32
  }
}

</mosaic_0001>

<llo_original>
// kernel: tpu_custom_call.1
$region0: #{tpu_custom_call.1}
  #allocation0 [shape = 'u32[]', space=smem, size = 0x4, offset = 0x4, fixed_abs, tag = 'smem constant byte address 0x4 - core index']
  #allocation1 [shape = 'u32[144,128]{1,0:T(1,128)}', space=vmem, size = 0x12000, scoped, tag = 'internal scratch']
  %s0 = inlined_call_operand.vmem [shape: f32[2,4,256], index: 0, kind: input, shape index: {}]
  %s1 = inlined_call_operand.vmem [shape: bf16[64,4], index: 1, kind: input, shape index: {}]
  %s2 = inlined_call_operand.vmem [shape: f32[64,1], index: 2, kind: input, shape index: {}]
  %s3 = inlined_call_operand.hbm [shape: f32[2,64,256], index: 3, kind: output, shape index: {}]
  %s4 = sld [smem:[#allocation0]]
  $region45: #{tpu_custom_call.1} parent=0
    _
  %s6 = ssub.s32 1, %s4
  %s7 = scalar_select 0, %s6, %s4
  $region1: #{tpu_custom_call.1} parent=0
    #allocation2 [shape = 'u8[131072]{0}', space=vmem, size = 0x20000, scoped, tag = 'output window, operand 0']
    #allocation3 [shape = 's32[2]{0}', space=sflag, size = 0x8, scoped, tag = 'scoped memory for tpu_custom_call.1']
    %8 = vsyncpa [#allocation3], 0
    %s9 = scalar_lea.sflag [#allocation3], 1
    %10 = vsyncpa %s9, 0
    loop: start=0, step=1, limit=4
    $region2: #{tpu_custom_call.1} parent=1 // loop_pre_header
      _
    $region3: #{tpu_custom_call.1} parent=1 // loop_header
      %s12 = sphi 0, %s16
      %p13 = scmp.ge.s32.totalorder %s12, 4
      %s22 = sphi 0, %s24
      %s25 = sphi 0, %s22
      %s26 = sphi 0, %s25
      %s42 = sphi 0, %s26
      %s46 = sphi 0, %s46
      %s48 = sphi 0, %s46
      %s49 = sphi 0, %s48
      %s63 = sphi 0, %s49
      %s67 = sphi 0, %s67
      %s69 = sphi 0, %s67
      %s70 = sphi 0, %s69
      %s84 = sphi 0, %s70
      %s90 = sphi 0, %s92
      %s93 = sphi 0, %s90
      %s94 = sphi 0, %s93
      %s110 = sphi 0, %s94
    $region4: #{tpu_custom_call.1} parent=1 // loop_header_branch
      %15 = sbr.rel (%p13) target = $region8
    $region5: #{tpu_custom_call.1} parent=1 // loop_body
      %s17 = ssub.s32 %s12, 1
      %s18 = ssub.s32 %s12, 2
      %s19 = sadd.s32 %s12, 1
      %s20 = ssub.s32 %s12, %s19
      %p21 = scmp.eq.s32.totalorder %s20, 0
      %s23 = sadd.s32 %s22, 1
      %s24 = scalar_select %p21, %s22, %s23
      %p27 = pneg %p21
      %p28 = scmp.eq.s32.totalorder %s12, 1
      %p29 = por %p27, %p28
      %p30 = scmp.ne.s32.totalorder %s22, %s25
      %p31 = scmp.eq.s32.totalorder %s12, 0
      %p32 = por %p30, %p31
      %p33 = scmp.ne.s32.totalorder %s22, %s25
      %p34 = scmp.eq.s32.totalorder %s17, 1
      %p35 = por %p33, %p34
      %p36 = scmp.ne.s32.totalorder %s25, %s26
      %p37 = scmp.eq.s32.totalorder %s17, 0
      %p38 = por %p36, %p37
      %p39 = scmp.ne.s32.totalorder %s25, %s26
      %p40 = scmp.eq.s32.totalorder %s18, 1
      %p41 = por %p39, %p40
      %p43 = scmp.ne.s32.totalorder %s26, %s42
      %p44 = scmp.eq.s32.totalorder %s18, 0
      %p45 = por %p43, %p44
      %s47 = sadd.s32 %s46, 1
      %p50 = scmp.eq.s32.totalorder %s12, 1
      %p51 = scmp.ne.s32.totalorder %s46, %s48
      %p52 = scmp.eq.s32.totalorder %s12, 0
      %p53 = por %p51, %p52
      %p54 = scmp.ne.s32.totalorder %s46, %s48
      %p55 = scmp.eq.s32.totalorder %s17, 1
      %p56 = por %p54, %p55
      %p57 = scmp.ne.s32.totalorder %s48, %s49
      %p58 = scmp.eq.s32.totalorder %s17, 0
      %p59 = por %p57, %p58
      %p60 = scmp.ne.s32.totalorder %s48, %s49
      %p61 = scmp.eq.s32.totalorder %s18, 1
      %p62 = por %p60, %p61
      %p64 = scmp.ne.s32.totalorder %s49, %s63
      %p65 = scmp.eq.s32.totalorder %s18, 0
      %p66 = por %p64, %p65
      %s68 = sadd.s32 %s67, 1
      %p71 = scmp.eq.s32.totalorder %s12, 1
      %p72 = scmp.ne.s32.totalorder %s67, %s69
      %p73 = scmp.eq.s32.totalorder %s12, 0
      %p74 = por %p72, %p73
      %p75 = scmp.ne.s32.totalorder %s67, %s69
      %p76 = scmp.eq.s32.totalorder %s17, 1
      %p77 = por %p75, %p76
      %p78 = scmp.ne.s32.totalorder %s69, %s70
      %p79 = scmp.eq.s32.totalorder %s17, 0
      %p80 = por %p78, %p79
      %p81 = scmp.ne.s32.totalorder %s69, %s70
      %p82 = scmp.eq.s32.totalorder %s18, 1
      %p83 = por %p81, %p82
      %p85 = scmp.ne.s32.totalorder %s70, %s84
      %p86 = scmp.eq.s32.totalorder %s18, 0
      %p87 = por %p85, %p86
      %s88 = ssub.s32 %s12, %s19
      %p89 = scmp.eq.s32.totalorder %s88, 0
      %s91 = sadd.s32 %s90, 1
      %s92 = scalar_select %p89, %s90, %s91
      %p95 = pneg %p89
      %p96 = scmp.eq.s32.totalorder %s12, 1
      %p97 = por %p95, %p96
      %p98 = scmp.ne.s32.totalorder %s90, %s93
      %p99 = scmp.eq.s32.totalorder %s12, 0
      %p100 = por %p98, %p99
      %p101 = scmp.ne.s32.totalorder %s90, %s93
      %p102 = scmp.eq.s32.totalorder %s17, 1
      %p103 = por %p101, %p102
      %p104 = scmp.ne.s32.totalorder %s93, %s94
      %p105 = scmp.eq.s32.totalorder %s17, 0
      %p106 = por %p104, %p105
      %p107 = scmp.ne.s32.totalorder %s93, %s94
      %p108 = scmp.eq.s32.totalorder %s18, 1
      %p109 = por %p107, %p108
      %p111 = scmp.ne.s32.totalorder %s94, %s110
      %p112 = scmp.eq.s32.totalorder %s18, 0
      %p113 = por %p111, %p112
      %p114 = scmp.le.s32.totalorder 1, %s12
      %p115 = scmp.lt.s32.totalorder %s12, 3
      %p116 = pnand %p114, %p115
      %p117 = pneg %p116
      // Predicated region
      $region9: #{tpu_custom_call.1} parent=5 // pred_check
        _
      $region10: #{tpu_custom_call.1} parent=5 // pred_check_branch
        %119 = sbr.rel (%p116) target = $region12
      $region11: #{tpu_custom_call.1} parent=5 // pred_region
        %s120 = ssub.s32 %s12, 1
        // Predicated region
        $region13: #{tpu_custom_call.1} parent=11 // pred_check
          %p121 = pneg %p59
        $region14: #{tpu_custom_call.1} parent=11 // pred_check_branch
          %123 = sbr.rel (%p121) target = $region16
        $region15: #{tpu_custom_call.1} parent=11 // pred_region
          _
        $region16: #{tpu_custom_call.1} parent=11 // pred_fallthru
          _
        // Predicated region
        $region17: #{tpu_custom_call.1} parent=11 // pred_check
          %p124 = pneg %p80
        $region18: #{tpu_custom_call.1} parent=11 // pred_check_branch
          %126 = sbr.rel (%p124) target = $region20
        $region19: #{tpu_custom_call.1} parent=11 // pred_region
          _
        $region20: #{tpu_custom_call.1} parent=11 // pred_fallthru
          _
      $region12: #{tpu_custom_call.1} parent=5 // pred_fallthru
        _
      %p127 = scmp.lt.s32.totalorder %s12, 2
      // Predicated region
      $region21: #{tpu_custom_call.1} parent=5 // pred_check
        %p128 = pneg %p127
      $region22: #{tpu_custom_call.1} parent=5 // pred_check_branch
        %130 = sbr.rel (%p128) target = $region24
      $region23: #{tpu_custom_call.1} parent=5 // pred_region
        // Predicated region
        $region25: #{tpu_custom_call.1} parent=23 // pred_check
          %p131 = pneg %p32
        $region26: #{tpu_custom_call.1} parent=23 // pred_check_branch
          %133 = sbr.rel (%p131) target = $region28
        $region27: #{tpu_custom_call.1} parent=23 // pred_region
          %p134 = scmp.lt.s32.totalorder %s12, 1
          %s135 = scalar_select %p134, %s12, 1
          %s136 = smul.addr %s135, 2
          %s137 = smul.addr %s136, 4
          %s138 = scalar_lea.vmem %s0, %s137
        $region28: #{tpu_custom_call.1} parent=23 // pred_fallthru
          _
      $region24: #{tpu_custom_call.1} parent=5 // pred_fallthru
        _
      %p139 = scmp.le.s32.totalorder 1, %s12
      %p140 = scmp.lt.s32.totalorder %s12, 3
      %p141 = pnand %p139, %p140
      %p142 = pneg %p141
      // Predicated region
      $region29: #{tpu_custom_call.1} parent=5 // pred_check
        _
      $region30: #{tpu_custom_call.1} parent=5 // pred_check_branch
        %144 = sbr.rel (%p141) target = $region32
      $region31: #{tpu_custom_call.1} parent=5 // pred_region
        %s145 = ssub.s32 %s12, 1
        %p146 = scmp.lt.s32.totalorder %s17, 1
        %s147 = scalar_select %p146, %s17, 1
        %s148 = smul.addr %s147, 2
        %s149 = smul.addr %s148, 4
        %s150 = scalar_lea.vmem %s0, %s149
        %p151 = pneg %p38
        %p152 = pneg %p35
        %p153 = pneg %p59
        %p154 = pneg %p56
        %p155 = pneg %p80
        %p156 = pneg %p77
        %p157 = pneg %p106
        %p158 = pneg %p103
        %s159 = sand.u32 %s93, 1
        %s160 = scalar_lea.sflag [#allocation3], %s159
        %s161 = sand.u32 %s93, 1
        %s162 = smul.addr %s161, 128
        %s163 = scalar_lea.vmem [#allocation2], %s162
        %p164 = scmp.lt.s32.totalorder %s17, 1
        %s165 = scalar_select %p164, %s17, 1
        %s166 = smul.addr %s165, 2
        %s167 = smul.addr %s166, 4
        %s168 = scalar_lea.vmem %s0, %s167
        %v170 = vld [vmem:[%s1] sm:$0xf]
        %v171 = vld [vmem:[%s1 + $0x4] sm:$0xf]
        %v172 = vld [vmem:[%s1 + $0x8] sm:$0xf]
        %v173 = vld [vmem:[%s1 + $0xc] sm:$0xf]
        %v174 = vld [vmem:[%s1 + $0x10] sm:$0xf]
        %v175 = vld [vmem:[%s1 + $0x14] sm:$0xf]
        %v176 = vld [vmem:[%s1 + $0x18] sm:$0xf]
        %v177 = vld [vmem:[%s1 + $0x1c] sm:$0xf]
        %v178 = vld [vmem:[%s2] sm:$0xff]
        %v179 = vld [vmem:[%s2 + $0x8] sm:$0xff]
        %v180 = vld [vmem:[%s2 + $0x10] sm:$0xff]
        %v181 = vld [vmem:[%s2 + $0x18] sm:$0xff]
        %v182 = vld [vmem:[%s2 + $0x20] sm:$0xff]
        %v183 = vld [vmem:[%s2 + $0x28] sm:$0xff]
        %v184 = vld [vmem:[%s2 + $0x30] sm:$0xff]
        %v185 = vld [vmem:[%s2 + $0x38] sm:$0xff]
        %v186 = vld [vmem:[%s168] sm:$0xff]
        %v188 = vcombine.high %v186, %v186
        %v190 = vpack.c.bf16 %v186, %v186
        %v191 = vpack.c.bf16 %v188, %v188
        %193 = vset.pattern.permute.xlu0 0
        %194 = vperm.xlu0 %193, %v178
        %v195 = vpop.permute.xlu0 %194
        %198 = vset.pattern.permute.xlu0 0
        %199 = vperm.xlu0 %198, %v179
        %v200 = vpop.permute.xlu0 %199
        %203 = vset.pattern.permute.xlu0 0
        %204 = vperm.xlu0 %203, %v180
        %v205 = vpop.permute.xlu0 %204
        %208 = vset.pattern.permute.xlu0 0
        %209 = vperm.xlu0 %208, %v181
        %v210 = vpop.permute.xlu0 %209
        %213 = vset.pattern.permute.xlu0 0
        %214 = vperm.xlu0 %213, %v182
        %v215 = vpop.permute.xlu0 %214
        %218 = vset.pattern.permute.xlu0 0
        %219 = vperm.xlu0 %218, %v183
        %v220 = vpop.permute.xlu0 %219
        %223 = vset.pattern.permute.xlu0 0
        %224 = vperm.xlu0 %223, %v184
        %v225 = vpop.permute.xlu0 %224
        %228 = vset.pattern.permute.xlu0 0
        %229 = vperm.xlu0 %228, %v185
        %v230 = vpop.permute.xlu0 %229
        %v240 = vunpack.c.l.b16 %v170
        %v241 = vunpack.c.l.b16 %v171
        %v242 = vunpack.c.l.b16 %v172
        %v243 = vunpack.c.l.b16 %v173
        %v244 = vunpack.c.l.b16 %v174
        %v245 = vunpack.c.l.b16 %v175
        %v246 = vunpack.c.l.b16 %v176
        %v247 = vunpack.c.l.b16 %v177
        %v248 = vpack.c.b16 %v241, %v240
        %v249 = vpack.c.b16 %v243, %v242
        %v250 = vpack.c.b16 %v245, %v244
        %v251 = vpack.c.b16 %v247, %v246
        %vm252 = vcmask 31744
        %v254 = vsel %vm252, %v248, 0
        %v257 = vsel %vm252, %v249, 0
        %v260 = vsel %vm252, %v250, 0
        %v263 = vsel %vm252, %v251, 0
        %vm265 = vcmask 1041408
        %v267 = vsel %vm265, %v190, 0
        %v270 = vsel %vm265, %v191, 0
        %272 = vmatprep.subr.bf16.mxu0 %v270
        %273 = vmatpush1.bf16.msra.mxu0 %v267
        %274 = vmatprep.subr.bf16.mxu0 0
        %275 = vmatpush1.bf16.msra.mxu0 0
        %276 = vmatprep.subr.bf16.mxu0 0
        %277 = vmatpush1.bf16.msra.mxu0 0
        %278 = vmatprep.subr.bf16.mxu0 0
        %279 = vmatpush1.bf16.msra.mxu0 0
        %280 = vmatprep.subr.bf16.mxu0 0
        %281 = vmatpush1.bf16.msra.mxu0 0
        %282 = vmatprep.subr.bf16.mxu0 0
        %283 = vmatpush1.bf16.msra.mxu0 0
        %284 = vmatprep.subr.bf16.mxu0 0
        %285 = vmatpush1.bf16.msra.mxu0 0
        %286 = vmatprep.subr.bf16.mxu0 0
        %287 = vmatpush1.bf16.msra.mxu0 0
        %288 = vmatprep.subr.bf16.mxu0 0
        %289 = vmatpush1.bf16.msra.mxu0 0
        %290 = vmatprep.subr.bf16.mxu0 0
        %291 = vmatpush1.bf16.msra.mxu0 0
        %292 = vmatprep.subr.bf16.mxu0 0
        %293 = vmatpush1.bf16.msra.mxu0 0
        %294 = vmatprep.subr.bf16.mxu0 0
        %295 = vmatpush1.bf16.msra.mxu0 0
        %296 = vmatprep.subr.bf16.mxu0 0
        %297 = vmatpush1.bf16.msra.mxu0 0
        %298 = vmatprep.subr.bf16.mxu0 0
        %299 = vmatpush1.bf16.msra.mxu0 0
        %300 = vmatprep.subr.bf16.mxu0 0
        %301 = vmatpush1.bf16.msra.mxu0 0
        %302 = vmatprep.subr.bf16.mxu0 0
        %303 = vmatpush1.bf16.msra.mxu0 0
        %304 = vmatprep.mubr.bf16.mxu0 0
        %305 = vmatmul.mubr.bf16.gmra.mrb[0].mxu0 %v254
        %v306 = vpop.f32.mrb[0].mxu0
        %v307 = vadd.f32 %v195, %v306
        %v308 = vpop.f32.mrb[0].mxu0
        %v309 = vadd.f32 %v195, %v308
        %v310 = vpop.f32.mrb[0].mxu0
        %v311 = vadd.f32 %v200, %v310
        %v312 = vpop.f32.mrb[0].mxu0
        %v313 = vadd.f32 %v200, %v312
        %314 = vmatprep.mubr.bf16.mxu0 0
        %315 = vmatmul.mubr.bf16.gmra.mrb[0].mxu0 %v257
        %v316 = vpop.f32.mrb[0].mxu0
        %v317 = vadd.f32 %v205, %v316
        %v318 = vpop.f32.mrb[0].mxu0
        %v319 = vadd.f32 %v205, %v318
        %v320 = vpop.f32.mrb[0].mxu0
        %v321 = vadd.f32 %v210, %v320
        %v322 = vpop.f32.mrb[0].mxu0
        %v323 = vadd.f32 %v210, %v322
        %324 = vmatprep.mubr.bf16.mxu0 0
        %325 = vmatmul.mubr.bf16.gmra.mrb[0].mxu0 %v260
        %v326 = vpop.f32.mrb[0].mxu0
        %v327 = vadd.f32 %v215, %v326
        %v328 = vpop.f32.mrb[0].mxu0
        %v329 = vadd.f32 %v215, %v328
        %v330 = vpop.f32.mrb[0].mxu0
        %v331 = vadd.f32 %v220, %v330
        %v332 = vpop.f32.mrb[0].mxu0
        %v333 = vadd.f32 %v220, %v332
        %334 = vmatprep.mubr.bf16.mxu0 0
        %335 = vmatmul.mubr.bf16.gmra.mrb[0].mxu0 %v263
        %v336 = vpop.f32.mrb[0].mxu0
        %v337 = vadd.f32 %v225, %v336
        %v338 = vpop.f32.mrb[0].mxu0
        %v339 = vadd.f32 %v225, %v338
        %v340 = vpop.f32.mrb[0].mxu0
        %v341 = vadd.f32 %v230, %v340
        %v342 = vpop.f32.mrb[0].mxu0
        %v343 = vadd.f32 %v230, %v342
        %344 = vdwg.mxu0
        %v345 = vmax.f32 %v307, 0.0
        %v346 = vmax.f32 %v309, 0.0
        %v347 = vmax.f32 %v311, 0.0
        %v348 = vmax.f32 %v313, 0.0
        %v349 = vmax.f32 %v317, 0.0
        %v350 = vmax.f32 %v319, 0.0
        %v351 = vmax.f32 %v321, 0.0
        %v352 = vmax.f32 %v323, 0.0
        %v353 = vmax.f32 %v327, 0.0
        %v354 = vmax.f32 %v329, 0.0
        %v355 = vmax.f32 %v331, 0.0
        %v356 = vmax.f32 %v333, 0.0
        %v357 = vmax.f32 %v337, 0.0
        %v358 = vmax.f32 %v339, 0.0
        %v359 = vmax.f32 %v341, 0.0
        %v360 = vmax.f32 %v343, 0.0
        %361 = vst [vmem:[%s163] sm:$0xff] %v345
        %362 = vst [vmem:[%s163 + $0x8] sm:$0xff] %v346
        %363 = vst [vmem:[%s163 + $0x10] sm:$0xff] %v347
        %364 = vst [vmem:[%s163 + $0x18] sm:$0xff] %v348
        %365 = vst [vmem:[%s163 + $0x20] sm:$0xff] %v349
        %366 = vst [vmem:[%s163 + $0x28] sm:$0xff] %v350
        %367 = vst [vmem:[%s163 + $0x30] sm:$0xff] %v351
        %368 = vst [vmem:[%s163 + $0x38] sm:$0xff] %v352
        %369 = vst [vmem:[%s163 + $0x40] sm:$0xff] %v353
        %370 = vst [vmem:[%s163 + $0x48] sm:$0xff] %v354
        %371 = vst [vmem:[%s163 + $0x50] sm:$0xff] %v355
        %372 = vst [vmem:[%s163 + $0x58] sm:$0xff] %v356
        %373 = vst [vmem:[%s163 + $0x60] sm:$0xff] %v357
        %374 = vst [vmem:[%s163 + $0x68] sm:$0xff] %v358
        %375 = vst [vmem:[%s163 + $0x70] sm:$0xff] %v359
        %376 = vst [vmem:[%s163 + $0x78] sm:$0xff] %v360
        %s377 = sand.u32 %s93, 1
        %s378 = scalar_lea.sflag [#allocation3], %s377
        %s379 = sand.u32 %s93, 1
        %s380 = smul.addr %s379, 128
        %s381 = scalar_lea.vmem [#allocation2], %s380
        // Predicated region
        $region33: #{tpu_custom_call.1} parent=31 // pred_check
          %p382 = pneg %p103
        $region34: #{tpu_custom_call.1} parent=31 // pred_check_branch
          %384 = sbr.rel (%p382) target = $region36
        $region35: #{tpu_custom_call.1} parent=31 // pred_region
          %s386 = ssub.s32 2048, 2048
          %387 = vsyncadd %s378, %s386
          %s388 = smul.addr %s17, 16
          %s389 = smul.addr %s388, 128
          %s390 = scalar_lea.hbm %s3, %s389
          %s391 = sshll.u32 %s381, 4
          %s392 = int_to_ptr.vmem [resolvable:$true] %s391
          %397 = dma.vmem_to_hbm [thread:$0]  %s392, 2048, %s390, %s378, 256, 256, 16
        $region36: #{tpu_custom_call.1} parent=31 // pred_fallthru
          _
      $region32: #{tpu_custom_call.1} parent=5 // pred_fallthru
        _
      %p398 = scmp.le.s32.totalorder 2, %s12
      // Predicated region
      $region37: #{tpu_custom_call.1} parent=5 // pred_check
        %p399 = pneg %p398
      $region38: #{tpu_custom_call.1} parent=5 // pred_check_branch
        %401 = sbr.rel (%p399) target = $region40
      $region39: #{tpu_custom_call.1} parent=5 // pred_region
        %s402 = ssub.s32 %s12, 2
        // Predicated region
        $region41: #{tpu_custom_call.1} parent=39 // pred_check
          %p403 = pneg %p109
        $region42: #{tpu_custom_call.1} parent=39 // pred_check_branch
          %405 = sbr.rel (%p403) target = $region44
        $region43: #{tpu_custom_call.1} parent=39 // pred_region
          %s406 = sand.u32 %s94, 1
          %s407 = scalar_lea.sflag [#allocation3], %s406
          %s408 = sand.u32 %s94, 1
          %s409 = smul.addr %s408, 128
          %s410 = scalar_lea.vmem [#allocation2], %s409
          %411 = dma.done %s407, 2048
        $region44: #{tpu_custom_call.1} parent=39 // pred_fallthru
          _
      $region40: #{tpu_custom_call.1} parent=5 // pred_fallthru
        _
    $region6: #{tpu_custom_call.1} parent=1 // loop_footer
      %s16 = sadd.s32 1, %s12
    $region7: #{tpu_custom_call.1} parent=1 // loop_footer_branch
      %11 = sbr.rel target = $region3
    $region8: #{tpu_custom_call.1} parent=1 // loop_exit
      _
    %412 = vsyncpa [#allocation3], 1
    %s413 = scalar_lea.sflag [#allocation3], 1
    %414 = vsyncpa %s413, 1

</llo_original>
